<compile_context>
chip_gen: v6e
topology: v6e:2x2x1
jax: 0.10.0
libtpu: 0.0.40
codegen_flags: <defaults>
</compile_context>

<pallas_src>
import functools

import jax
import jax.numpy as jnp
from jax.experimental import pallas as pl
from jax.experimental.pallas import tpu as pltpu

IMAGE_SIZE_X = 15
IMAGE_SIZE_Y = 16
IN_DIM = IMAGE_SIZE_Y * IMAGE_SIZE_X + 1      # 241
IN_DIM_PAD = 256                              # lane-aligned feature dim
HIDDEN = (512, 256, 128, 1)
DEFAULT_TM = 1024                             # batch tile (amortizes per-step overhead)


def _round_up(n, m):
    return ((n + m - 1) // m) * m


def _leaky_relu(x, slope=0.2):
    # mul + max instead of where(cmp + select); valid for 0 < slope < 1.
    return jnp.maximum(x, slope * x)


def _bf16_valu_ok():
    """True when the VPU has native bf16 VALU (v6e / v7x)."""
    try:
        kind = jax.devices()[0].device_kind.lower()
    except Exception:
        return True
    for old in ("v2", "v3", "v4", "v5e", "v5 lite", "v5lite"):
        if old in kind:
            return False
    return True


def _discriminator_kernel(x_ref,
                          w1_ref, b1_ref,
                          w2_ref, b2_ref,
                          w3_ref, b3_ref,
                          w4_ref, b4_ref,
                          out_ref,
                          *, bf16_epilogue):
    tm = x_ref.shape[0]

    # Statically unroll over independent row sub-tiles so the MXU matmul of
    # sub-tile j can co-issue with the VPU epilogue of sub-tile j-1.
    n_sub = 1
    for cand in (4, 2):
        if tm % (cand * 128) == 0 and tm // cand >= 128:
            n_sub = cand
            break
    sub = tm // n_sub

    # Hoist weight/bias loads (VMEM-resident across the whole body).
    w1 = w1_ref[...]
    b1 = b1_ref[...]
    w2 = w2_ref[...]
    b2 = b2_ref[...]
    w3 = w3_ref[...]
    b3 = b3_ref[...]
    w4 = w4_ref[...]
    b4 = b4_ref[...]

    def epilogue(acc_f32, bias_f32):
        if bf16_epilogue:
            # bias add in f32 (on the f32 accumulator), LeakyReLU in bf16
            # (packed vregs, half the element ops) -- v6e/v7x.
            return _leaky_relu((acc_f32 + bias_f32).astype(jnp.bfloat16))
        # v5e and older: no bf16 VALU; keep LeakyReLU in f32, cast afterwards.
        return _leaky_relu(acc_f32 + bias_f32).astype(jnp.bfloat16)

    parts = []
    for s in range(n_sub):
        x = x_ref[s * sub:(s + 1) * sub, :]                             # (sub, 256) bf16
        # Layer 1: 256(=241 padded) -> 512
        h = epilogue(jnp.dot(x, w1, preferred_element_type=jnp.float32), b1)
        # Layer 2: 512 -> 256
        h = epilogue(jnp.dot(h, w2, preferred_element_type=jnp.float32), b2)
        # Layer 3: 256 -> 128
        h = epilogue(jnp.dot(h, w3, preferred_element_type=jnp.float32), b3)
        # Layer 4: 128 -> 1, lane-dense: (1,128) contracted with (sub,128) on
        # their last axes -> (1, sub) so the batch lands along lanes and the
        # final store is a full-width vst rather than masked last-dim-1 writes.
        z = jax.lax.dot_general(
            w4, h,
            dimension_numbers=(((1,), (1,)), ((), ())),
            preferred_element_type=jnp.float32) + b4                    # (1, sub)
        # Exact sigmoid (exp on EUP + one tiny exact divide); guarantees the
        # output stays inside [0, 1].
        parts.append(1.0 / (1.0 + jnp.exp(-z)))

    out_ref[0] = parts[0] if n_sub == 1 else jnp.concatenate(parts, axis=1)


def _const_spec(shape):
    # Full-array block with a constant index_map: copied to VMEM once and kept
    # resident across every grid step.
    return pl.BlockSpec(shape, lambda i, _n=len(shape): (0,) * _n)


def init_params(key):
    """Torch-like nn.Linear init (U[-1/sqrt(fan_in), 1/sqrt(fan_in)]).

    Weights are stored (in_features, out_features) so forward is x @ W + b,
    identical to torch's x @ W_t.T + b.
    """
    params = []
    in_dim = IN_DIM
    for out_dim in HIDDEN:
        key, kw, kb = jax.random.split(key, 3)
        bound = 1.0 / jnp.sqrt(jnp.float32(in_dim))
        w = jax.random.uniform(kw, (in_dim, out_dim), jnp.float32, -bound, bound)
        b = jax.random.uniform(kb, (1, out_dim), jnp.float32, -bound, bound)
        params.append((w, b))
        in_dim = out_dim
    return params


def discriminator_forward(img, measurement, params, *, tm=None):
    B = img.shape[0]
    # Glue: flatten + concat (matches torch .view / torch.cat semantics).
    img_flat = img.reshape(B, -1)
    meas_flat = measurement.reshape(B, -1)
    x = jnp.concatenate([img_flat, meas_flat], axis=1).astype(jnp.float32)  # (B, 241)

    if tm is None:
        tm = min(DEFAULT_TM, _round_up(B, 8))
        # Keep >= 2 (ideally 4) grid blocks for large batches so a megacore
        # chip (v7x) can shard the "parallel" batch axis across both TCs.
        if B >= 512:
            tm = min(tm, max(256, _round_up((B + 3) // 4, 8)))
    num_blocks = pl.cdiv(B, tm)
    b_pad = num_blocks * tm

    # Single fused pad: concat -> bf16 -> zero-pad batch and features 241->256.
    # (Padded columns/rows are exact zeros, so layer-1 results are unchanged.)
    x_pad = jnp.pad(x.astype(jnp.bfloat16),
                    ((0, b_pad - B), (0, IN_DIM_PAD - IN_DIM)))

    (w1, b1), (w2, b2), (w3, b3), (w4, b4) = params
    # bf16 weights (zero-padded w1 rows), f32 biases (added to f32 accumulator).
    w1p = jnp.pad(w1.astype(jnp.bfloat16), ((0, IN_DIM_PAD - IN_DIM), (0, 0)))
    w2p = w2.astype(jnp.bfloat16)
    w3p = w3.astype(jnp.bfloat16)
    w4p = w4.reshape(1, HIDDEN[2]).astype(jnp.bfloat16)                 # (1, 128) row
    b1p = b1.astype(jnp.float32)
    b2p = b2.astype(jnp.float32)
    b3p = b3.astype(jnp.float32)
    b4p = b4.reshape(1, 1).astype(jnp.float32)

    const_args = [w1p, b1p, w2p, b2p, w3p, b3p, w4p, b4p]
    in_specs = ([pl.BlockSpec((tm, IN_DIM_PAD), lambda i: (i, 0))]
                + [_const_spec(a.shape) for a in const_args])

    compiler_kwargs = dict(dimension_semantics=("parallel",))
    if tm >= 2048:
        # Intermediates + double-buffered x tile approach the scoped default
        # (16 MiB v5e / 32 MiB v6e-v7x) at very large tiles; leave headroom
        # below v7x's 64 MiB physical VMEM.
        compiler_kwargs["vmem_limit_bytes"] = 48 * 1024 * 1024

    kernel = functools.partial(_discriminator_kernel,
                               bf16_epilogue=_bf16_valu_ok())

    out = pl.pallas_call(
        kernel,
        out_shape=jax.ShapeDtypeStruct((num_blocks, 1, tm), jnp.float32),
        grid=(num_blocks,),
        in_specs=in_specs,
        out_specs=pl.BlockSpec((1, 1, tm), lambda i: (i, 0, 0)),
        compiler_params=pltpu.CompilerParams(**compiler_kwargs),
    )(x_pad, *const_args)

    # (num_blocks, 1, tm) lane-dense rows -> (B, 1); drop batch padding.
    return out.reshape(-1)[:B].reshape(B, 1)


def _reference_forward(img, measurement, params):
    B = img.shape[0]
    x = jnp.concatenate(
        [img.reshape(B, -1), measurement.reshape(B, -1)], axis=1
    ).astype(jnp.float32)
    (w1, b1), (w2, b2), (w3, b3), (w4, b4) = params
    h = _leaky_relu(x @ w1 + b1)
    h = _leaky_relu(h @ w2 + b2)
    h = _leaky_relu(h @ w3 + b3)
    return jax.nn.sigmoid(h @ w4 + b4)


if __name__ == "__main__":
    key = jax.random.PRNGKey(0)
    k_img, k_meas, k_params = jax.random.split(key, 3)

    B = 4
    # NCHW image like the PyTorch 4-D branch: (B, 1, 16, 15)
    img = jax.random.normal(k_img, (B, 1, IMAGE_SIZE_Y, IMAGE_SIZE_X), jnp.float32)
    measurement = jax.random.normal(k_meas, (B, 1), jnp.float32)

    params = init_params(k_params)

    validity = discriminator_forward(img, measurement, params)
    validity = jax.block_until_ready(validity)

    ref = _reference_forward(img, measurement, params)
    assert validity.shape == (B, 1)
    # bf16 weights / bf16 inter-layer activations => looser tolerance vs pure f32.
    assert jnp.allclose(validity, ref, atol=2.5e-2, rtol=0.0), "mismatch vs JAX reference"
    assert bool(jnp.all((validity >= 0.0) & (validity <= 1.0)))

    # Exercise a larger, multi-block batch (covers the sub-tile-unrolled path
    # and the multi-block v7x tile cap) for correctness as well.
    B2 = 1024
    k_img2, k_meas2 = jax.random.split(key, 2)
    img2 = jax.random.normal(k_img2, (B2, IMAGE_SIZE_Y * IMAGE_SIZE_X), jnp.float32)
    meas2 = jax.random.normal(k_meas2, (B2, 1), jnp.float32)
    v2 = jax.block_until_ready(discriminator_forward(img2, meas2, params))
    r2 = _reference_forward(img2, meas2, params)
    assert v2.shape == (B2, 1)
    assert jnp.allclose(v2, r2, atol=2.5e-2, rtol=0.0), "mismatch vs JAX reference (large batch)"
    assert bool(jnp.all((v2 >= 0.0) & (v2 <= 1.0)))

    print("KERNEL_OK")
</pallas_src>

<mosaic_0001>
module attributes {stable_mosaic.version = 11 : i64} {
  func.func @_discriminator_kernel(%arg0: i32, %arg1: memref<8x256xbf16, #tpu.memory_space<vmem>>, %arg2: memref<256x512xbf16, #tpu.memory_space<vmem>>, %arg3: memref<1x512xf32, #tpu.memory_space<vmem>>, %arg4: memref<512x256xbf16, #tpu.memory_space<vmem>>, %arg5: memref<1x256xf32, #tpu.memory_space<vmem>>, %arg6: memref<256x128xbf16, #tpu.memory_space<vmem>>, %arg7: memref<1x128xf32, #tpu.memory_space<vmem>>, %arg8: memref<1x128xbf16, #tpu.memory_space<vmem>>, %arg9: memref<1x1xf32, #tpu.memory_space<vmem>>, %arg10: memref<1x1x8xf32, #tpu.memory_space<vmem>>) attributes {dimension_semantics = [#tpu.dimension_semantics<parallel>], iteration_bounds = array<i64: 1>, scalar_prefetch = 0 : i64, scratch_operands = 0 : i64, tpu.core_type = #tpu.core_type<tc>, window_params = [{transform_indices = @transform_0, window_bounds = array<i64: 8, 256>}, {pipeline_mode = #tpu.pipeline_mode<synchronous>, transform_indices = @transform_1, window_bounds = array<i64: 256, 512>}, {pipeline_mode = #tpu.pipeline_mode<synchronous>, transform_indices = @transform_2, window_bounds = array<i64: 1, 512>}, {pipeline_mode = #tpu.pipeline_mode<synchronous>, transform_indices = @transform_3, window_bounds = array<i64: 512, 256>}, {pipeline_mode = #tpu.pipeline_mode<synchronous>, transform_indices = @transform_4, window_bounds = array<i64: 1, 256>}, {pipeline_mode = #tpu.pipeline_mode<synchronous>, transform_indices = @transform_5, window_bounds = array<i64: 256, 128>}, {pipeline_mode = #tpu.pipeline_mode<synchronous>, transform_indices = @transform_6, window_bounds = array<i64: 1, 128>}, {pipeline_mode = #tpu.pipeline_mode<synchronous>, transform_indices = @transform_7, window_bounds = array<i64: 1, 128>}, {pipeline_mode = #tpu.pipeline_mode<synchronous>, transform_indices = @transform_8, window_bounds = array<i64: 1, 1>}, {transform_indices = @transform_9, window_bounds = array<i64: 1, 1, 8>}]} {
    %c0 = arith.constant 0 : index
    %c0_0 = arith.constant 0 : index
    %0 = vector.load %arg2[%c0, %c0_0] : memref<256x512xbf16, #tpu.memory_space<vmem>>, vector<256x512xbf16>
    %c0_1 = arith.constant 0 : index
    %c0_2 = arith.constant 0 : index
    %1 = vector.load %arg3[%c0_1, %c0_2] : memref<1x512xf32, #tpu.memory_space<vmem>>, vector<1x512xf32>
    %c0_3 = arith.constant 0 : index
    %c0_4 = arith.constant 0 : index
    %2 = vector.load %arg4[%c0_3, %c0_4] : memref<512x256xbf16, #tpu.memory_space<vmem>>, vector<512x256xbf16>
    %c0_5 = arith.constant 0 : index
    %c0_6 = arith.constant 0 : index
    %3 = vector.load %arg5[%c0_5, %c0_6] : memref<1x256xf32, #tpu.memory_space<vmem>>, vector<1x256xf32>
    %c0_7 = arith.constant 0 : index
    %c0_8 = arith.constant 0 : index
    %4 = vector.load %arg6[%c0_7, %c0_8] : memref<256x128xbf16, #tpu.memory_space<vmem>>, vector<256x128xbf16>
    %c0_9 = arith.constant 0 : index
    %c0_10 = arith.constant 0 : index
    %5 = vector.load %arg7[%c0_9, %c0_10] : memref<1x128xf32, #tpu.memory_space<vmem>>, vector<1x128xf32>
    %c0_11 = arith.constant 0 : index
    %c0_12 = arith.constant 0 : index
    %6 = vector.load %arg8[%c0_11, %c0_12] : memref<1x128xbf16, #tpu.memory_space<vmem>>, vector<1x128xbf16>
    %c0_13 = arith.constant 0 : index
    %c0_14 = arith.constant 0 : index
    %7 = vector.load %arg9[%c0_13, %c0_14] : memref<1x1xf32, #tpu.memory_space<vmem>>, vector<1x1xf32>
    %c0_15 = arith.constant 0 : index
    %c0_16 = arith.constant 0 : index
    %8 = vector.load %arg1[%c0_15, %c0_16] : memref<8x256xbf16, #tpu.memory_space<vmem>>, vector<8x256xbf16>
    %cst = arith.constant dense<0.000000e+00> : vector<8x512xf32>
    %9 = tpu.matmul %8, %0, %cst {dimension_numbers = #tpu.dot_dimension_numbers<[1], [0], [0], [1], [0, 0, 1, 1], [], []>} : vector<8x256xbf16>, vector<256x512xbf16>, vector<8x512xf32> -> vector<8x512xf32>
    %10 = vector.broadcast %1 : vector<1x512xf32> to vector<8x512xf32>
    %11 = arith.addf %9, %10 : vector<8x512xf32>
    %12 = arith.truncf %11 : vector<8x512xf32> to vector<8x512xbf16>
    %cst_17 = arith.constant 2.001950e-01 : bf16
    %13 = vector.broadcast %cst_17 : bf16 to vector<8x512xbf16>
    %14 = arith.mulf %13, %12 : vector<8x512xbf16>
    %15 = arith.maximumf %12, %14 : vector<8x512xbf16>
    %cst_18 = arith.constant dense<0.000000e+00> : vector<8x256xf32>
    %16 = tpu.matmul %15, %2, %cst_18 {dimension_numbers = #tpu.dot_dimension_numbers<[1], [0], [0], [1], [0, 0, 1, 1], [], []>} : vector<8x512xbf16>, vector<512x256xbf16>, vector<8x256xf32> -> vector<8x256xf32>
    %17 = vector.broadcast %3 : vector<1x256xf32> to vector<8x256xf32>
    %18 = arith.addf %16, %17 : vector<8x256xf32>
    %19 = arith.truncf %18 : vector<8x256xf32> to vector<8x256xbf16>
    %cst_19 = arith.constant 2.001950e-01 : bf16
    %20 = vector.broadcast %cst_19 : bf16 to vector<8x256xbf16>
    %21 = arith.mulf %20, %19 : vector<8x256xbf16>
    %22 = arith.maximumf %19, %21 : vector<8x256xbf16>
    %cst_20 = arith.constant dense<0.000000e+00> : vector<8x128xf32>
    %23 = tpu.matmul %22, %4, %cst_20 {dimension_numbers = #tpu.dot_dimension_numbers<[1], [0], [0], [1], [0, 0, 1, 1], [], []>} : vector<8x256xbf16>, vector<256x128xbf16>, vector<8x128xf32> -> vector<8x128xf32>
    %24 = vector.broadcast %5 : vector<1x128xf32> to vector<8x128xf32>
    %25 = arith.addf %23, %24 : vector<8x128xf32>
    %26 = arith.truncf %25 : vector<8x128xf32> to vector<8x128xbf16>
    %cst_21 = arith.constant 2.001950e-01 : bf16
    %27 = vector.broadcast %cst_21 : bf16 to vector<8x128xbf16>
    %28 = arith.mulf %27, %26 : vector<8x128xbf16>
    %29 = arith.maximumf %26, %28 : vector<8x128xbf16>
    %cst_22 = arith.constant dense<0.000000e+00> : vector<1x8xf32>
    %30 = tpu.matmul %6, %29, %cst_22 {dimension_numbers = #tpu.dot_dimension_numbers<[1], [1], [0], [0], [0, 0, 1, 0], [], []>} : vector<1x128xbf16>, vector<8x128xbf16>, vector<1x8xf32> -> vector<1x8xf32>
    %31 = vector.broadcast %7 : vector<1x1xf32> to vector<1x8xf32>
    %32 = arith.addf %30, %31 : vector<1x8xf32>
    %cst_23 = arith.constant 0.000000e+00 : f32
    %33 = vector.broadcast %cst_23 : f32 to vector<1x8xf32>
    %34 = arith.subf %33, %32 : vector<1x8xf32>
    %35 = math.exp %34 : vector<1x8xf32>
    %cst_24 = arith.constant 1.000000e+00 : f32
    %36 = vector.broadcast %cst_24 : f32 to vector<1x8xf32>
    %37 = arith.addf %36, %35 : vector<1x8xf32>
    %cst_25 = arith.constant 1.000000e+00 : f32
    %38 = vector.broadcast %cst_25 : f32 to vector<1x8xf32>
    %39 = arith.divf %38, %37 : vector<1x8xf32>
    %c0_26 = arith.constant 0 : index
    %c0_27 = arith.constant 0 : index
    %c0_28 = arith.constant 0 : index
    %40 = vector.load %arg10[%c0_26, %c0_27, %c0_28] : memref<1x1x8xf32, #tpu.memory_space<vmem>>, vector<1x1x8xf32>
    %41 = vector.shape_cast %40 : vector<1x1x8xf32> to vector<1x8xf32>
    %42 = vector.shape_cast %39 : vector<1x8xf32> to vector<1x1x8xf32>
    tpu.vector_store %arg10[%c0_26, %c0_27, %c0_28], %42 {strides = array<i32>} : memref<1x1x8xf32, #tpu.memory_space<vmem>>, vector<1x1x8xf32>,
    return
  }
  func.func @transform_0(%arg0: i32) -> (i32, i32) {
    %c0_i32 = arith.constant 0 : i32
    %c0_i32_0 = arith.constant 0 : i32
    return %arg0, %c0_i32 : i32, i32
  }
  func.func @transform_1(%arg0: i32) -> (i32, i32) {
    %c0_i32 = arith.constant 0 : i32
    %c0_i32_0 = arith.constant 0 : i32
    %c0_i32_1 = arith.constant 0 : i32
    return %c0_i32, %c0_i32_0 : i32, i32
  }
  func.func @transform_2(%arg0: i32) -> (i32, i32) {
    %c0_i32 = arith.constant 0 : i32
    %c0_i32_0 = arith.constant 0 : i32
    %c0_i32_1 = arith.constant 0 : i32
    return %c0_i32, %c0_i32_0 : i32, i32
  }
  func.func @transform_3(%arg0: i32) -> (i32, i32) {
    %c0_i32 = arith.constant 0 : i32
    %c0_i32_0 = arith.constant 0 : i32
    %c0_i32_1 = arith.constant 0 : i32
    return %c0_i32, %c0_i32_0 : i32, i32
  }
  func.func @transform_4(%arg0: i32) -> (i32, i32) {
    %c0_i32 = arith.constant 0 : i32
    %c0_i32_0 = arith.constant 0 : i32
    %c0_i32_1 = arith.constant 0 : i32
    return %c0_i32, %c0_i32_0 : i32, i32
  }
  func.func @transform_5(%arg0: i32) -> (i32, i32) {
    %c0_i32 = arith.constant 0 : i32
    %c0_i32_0 = arith.constant 0 : i32
    %c0_i32_1 = arith.constant 0 : i32
    return %c0_i32, %c0_i32_0 : i32, i32
  }
  func.func @transform_6(%arg0: i32) -> (i32, i32) {
    %c0_i32 = arith.constant 0 : i32
    %c0_i32_0 = arith.constant 0 : i32
    %c0_i32_1 = arith.constant 0 : i32
    return %c0_i32, %c0_i32_0 : i32, i32
  }
  func.func @transform_7(%arg0: i32) -> (i32, i32) {
    %c0_i32 = arith.constant 0 : i32
    %c0_i32_0 = arith.constant 0 : i32
    %c0_i32_1 = arith.constant 0 : i32
    return %c0_i32, %c0_i32_0 : i32, i32
  }
  func.func @transform_8(%arg0: i32) -> (i32, i32) {
    %c0_i32 = arith.constant 0 : i32
    %c0_i32_0 = arith.constant 0 : i32
    %c0_i32_1 = arith.constant 0 : i32
    return %c0_i32, %c0_i32_0 : i32, i32
  }
  func.func @transform_9(%arg0: i32) -> (i32, i32, i32) {
    %c0_i32 = arith.constant 0 : i32
    %c0_i32_0 = arith.constant 0 : i32
    %c0_i32_1 = arith.constant 0 : i32
    return %arg0, %c0_i32, %c0_i32_0 : i32, i32, i32
  }
}

</mosaic_0001>

<llo_original>
// kernel: tpu_custom_call.1
$region0: #{tpu_custom_call.1}
  #allocation0 [shape = 'u32[]', space=smem, size = 0x4, offset = 0x4, fixed_abs, tag = 'smem constant byte address 0x4 - core index']
  #allocation1 [shape = 'u32[144,128]{1,0:T(1,128)}', space=vmem, size = 0x12000, scoped, tag = 'internal scratch']
  #allocation2 [shape = 'f32[1,1]{1,0:T(1,128)S(1)}', space=vmem, size = 0x200, scoped, tag = 'scoped memory for tpu_custom_call.1']
  %s0 = inlined_call_operand.hbm [shape: bf16[8,256], index: 0, kind: input, shape index: {}]
  %s1 = inlined_call_operand.hbm [shape: bf16[256,512], index: 1, kind: input, shape index: {}]
  %s2 = inlined_call_operand.vmem [shape: f32[1,512], index: 2, kind: input, shape index: {}]
  %s3 = inlined_call_operand.hbm [shape: bf16[512,256], index: 3, kind: input, shape index: {}]
  %s4 = inlined_call_operand.vmem [shape: f32[1,256], index: 4, kind: input, shape index: {}]
  %s5 = inlined_call_operand.hbm [shape: bf16[256,128], index: 5, kind: input, shape index: {}]
  %s6 = inlined_call_operand.vmem [shape: f32[1,128], index: 6, kind: input, shape index: {}]
  %s7 = inlined_call_operand.vmem [shape: bf16[1,128], index: 7, kind: input, shape index: {}]
  %s8 = inlined_call_operand.<no memory space> [shape: f32[1,1], index: 8, kind: input, shape index: {}]
  %s9 = inlined_call_operand.hbm [shape: f32[1,1,8], index: 9, kind: output, shape index: {}]
  %s10 = sld [smem:[#allocation0]]
  $region62: #{tpu_custom_call.1} parent=0
    _
  %s12 = ssub.s32 1, %s10
  %s13 = scalar_select 0, %s12, %s10
  %v14 = vstv %s8
  %15 = vst [vmem:[#allocation2] sm:$0x1] %v14
  $region1: #{tpu_custom_call.1} parent=0
    #allocation3 [shape = 'u8[4096]{0}', space=vmem, size = 0x1000, scoped, tag = 'input window, operand 0, single buffered']
    #allocation4 [shape = 's32[1]{0}', space=sflag, size = 0x4, scoped, tag = 'scoped memory for tpu_custom_call.1']
    #allocation5 [shape = 's32[1]{0}', space=sflag, size = 0x4, scoped, tag = 'scoped memory for tpu_custom_call.1']
    #allocation6 [shape = 'u8[262144]{0}', space=vmem, size = 0x40000, scoped, tag = 'input window, operand 1, single buffered']
    #allocation7 [shape = 's32[1]{0}', space=sflag, size = 0x4, scoped, tag = 'scoped memory for tpu_custom_call.1']
    #allocation8 [shape = 'u8[262144]{0}', space=vmem, size = 0x40000, scoped, tag = 'input window, operand 3, single buffered']
    #allocation9 [shape = 'u8[65536]{0}', space=vmem, size = 0x10000, scoped, tag = 'input window, operand 5, single buffered']
    #allocation10 [shape = 's32[1]{0}', space=sflag, size = 0x4, scoped, tag = 'scoped memory for tpu_custom_call.1']
    #allocation11 [shape = 'u8[512]{0}', space=vmem, size = 0x400, scoped, tag = 'output window, operand 0, single buffered']
    %16 = vsyncpa [#allocation4], 0
    %17 = vsyncpa [#allocation7], 0
    %18 = vsyncpa [#allocation10], 0
    %19 = vsyncpa [#allocation5], 0
    // Predicated region
    $region2: #{tpu_custom_call.1} parent=1 // pred_check
      _
    $region3: #{tpu_custom_call.1} parent=1 // pred_check_branch
      %21 = sbr.rel (0) target = $region5
    $region4: #{tpu_custom_call.1} parent=1 // pred_region
      %s23 = ssub.s32 128, 128
      %24 = vsyncadd [#allocation4], %s23
      %s26 = sshll.u32 [#allocation3], 4
      %s27 = int_to_ptr.vmem [resolvable:$true] %s26
      %29 = dma.hbm_to_vmem [thread:$0]  %s0, 128, %s27, [#allocation4]
    $region5: #{tpu_custom_call.1} parent=1 // pred_fallthru
      _
    // Predicated region
    $region6: #{tpu_custom_call.1} parent=1 // pred_check
      _
    $region7: #{tpu_custom_call.1} parent=1 // pred_check_branch
      %31 = sbr.rel (0) target = $region9
    $region8: #{tpu_custom_call.1} parent=1 // pred_region
      %s33 = ssub.s32 8192, 8192
      %34 = vsyncadd [#allocation7], %s33
      %s35 = sshll.u32 [#allocation6], 4
      %s36 = int_to_ptr.vmem [resolvable:$true] %s35
      %41 = dma.hbm_to_vmem [thread:$0]  %s1, 8192, %s36, [#allocation7], 256, 256, 16
    $region9: #{tpu_custom_call.1} parent=1 // pred_fallthru
      _
    // Predicated region
    $region10: #{tpu_custom_call.1} parent=1 // pred_check
      _
    $region11: #{tpu_custom_call.1} parent=1 // pred_check_branch
      %43 = sbr.rel (0) target = $region13
    $region12: #{tpu_custom_call.1} parent=1 // pred_region
      _
    $region13: #{tpu_custom_call.1} parent=1 // pred_fallthru
      _
    // Predicated region
    $region14: #{tpu_custom_call.1} parent=1 // pred_check
      _
    $region15: #{tpu_custom_call.1} parent=1 // pred_check_branch
      %45 = sbr.rel (0) target = $region17
    $region16: #{tpu_custom_call.1} parent=1 // pred_region
      %s47 = ssub.s32 8192, 8192
      %48 = vsyncadd [#allocation7], %s47
      %s49 = sshll.u32 [#allocation8], 4
      %s50 = int_to_ptr.vmem [resolvable:$true] %s49
      %55 = dma.hbm_to_vmem [thread:$0]  %s3, 8192, %s50, [#allocation7], 128, 128, 8
    $region17: #{tpu_custom_call.1} parent=1 // pred_fallthru
      _
    // Predicated region
    $region18: #{tpu_custom_call.1} parent=1 // pred_check
      _
    $region19: #{tpu_custom_call.1} parent=1 // pred_check_branch
      %57 = sbr.rel (0) target = $region21
    $region20: #{tpu_custom_call.1} parent=1 // pred_region
      _
    $region21: #{tpu_custom_call.1} parent=1 // pred_fallthru
      _
    // Predicated region
    $region22: #{tpu_custom_call.1} parent=1 // pred_check
      _
    $region23: #{tpu_custom_call.1} parent=1 // pred_check_branch
      %59 = sbr.rel (0) target = $region25
    $region24: #{tpu_custom_call.1} parent=1 // pred_region
      %s61 = ssub.s32 2048, 2048
      %62 = vsyncadd [#allocation10], %s61
      %s63 = sshll.u32 [#allocation9], 4
      %s64 = int_to_ptr.vmem [resolvable:$true] %s63
      %69 = dma.hbm_to_vmem [thread:$0]  %s5, 2048, %s64, [#allocation10], 64, 64, 4
    $region25: #{tpu_custom_call.1} parent=1 // pred_fallthru
      _
    // Predicated region
    $region26: #{tpu_custom_call.1} parent=1 // pred_check
      _
    $region27: #{tpu_custom_call.1} parent=1 // pred_check_branch
      %71 = sbr.rel (0) target = $region29
    $region28: #{tpu_custom_call.1} parent=1 // pred_region
      _
    $region29: #{tpu_custom_call.1} parent=1 // pred_fallthru
      _
    // Predicated region
    $region30: #{tpu_custom_call.1} parent=1 // pred_check
      _
    $region31: #{tpu_custom_call.1} parent=1 // pred_check_branch
      %73 = sbr.rel (0) target = $region33
    $region32: #{tpu_custom_call.1} parent=1 // pred_region
      _
    $region33: #{tpu_custom_call.1} parent=1 // pred_fallthru
      _
    // Predicated region
    $region34: #{tpu_custom_call.1} parent=1 // pred_check
      _
    $region35: #{tpu_custom_call.1} parent=1 // pred_check_branch
      %75 = sbr.rel (0) target = $region37
    $region36: #{tpu_custom_call.1} parent=1 // pred_region
      _
    $region37: #{tpu_custom_call.1} parent=1 // pred_fallthru
      _
    // Predicated region
    $region38: #{tpu_custom_call.1} parent=1 // pred_check
      _
    $region39: #{tpu_custom_call.1} parent=1 // pred_check_branch
      %77 = sbr.rel (0) target = $region41
    $region40: #{tpu_custom_call.1} parent=1 // pred_region
      %78 = dma.done [#allocation4], 128
    $region41: #{tpu_custom_call.1} parent=1 // pred_fallthru
      _
    // Predicated region
    $region42: #{tpu_custom_call.1} parent=1 // pred_check
      _
    $region43: #{tpu_custom_call.1} parent=1 // pred_check_branch
      %80 = sbr.rel (0) target = $region45
    $region44: #{tpu_custom_call.1} parent=1 // pred_region
      %81 = dma.done [#allocation7], 8192
    $region45: #{tpu_custom_call.1} parent=1 // pred_fallthru
      _
    // Predicated region
    $region46: #{tpu_custom_call.1} parent=1 // pred_check
      _
    $region47: #{tpu_custom_call.1} parent=1 // pred_check_branch
      %83 = sbr.rel (0) target = $region49
    $region48: #{tpu_custom_call.1} parent=1 // pred_region
      %84 = dma.done [#allocation7], 8192
    $region49: #{tpu_custom_call.1} parent=1 // pred_fallthru
      _
    // Predicated region
    $region50: #{tpu_custom_call.1} parent=1 // pred_check
      _
    $region51: #{tpu_custom_call.1} parent=1 // pred_check_branch
      %86 = sbr.rel (0) target = $region53
    $region52: #{tpu_custom_call.1} parent=1 // pred_region
      %87 = dma.done [#allocation10], 2048
    $region53: #{tpu_custom_call.1} parent=1 // pred_fallthru
      _
    %v90 = vld [vmem:[#allocation6] sm:$0xff]
    %v91 = vld [vmem:[#allocation6 + $0x8] sm:$0xff]
    %v92 = vld [vmem:[#allocation6 + $0x10] sm:$0xff]
    %v93 = vld [vmem:[#allocation6 + $0x18] sm:$0xff]
    %v94 = vld [vmem:[#allocation6 + $0x20] sm:$0xff]
    %v95 = vld [vmem:[#allocation6 + $0x28] sm:$0xff]
    %v96 = vld [vmem:[#allocation6 + $0x30] sm:$0xff]
    %v97 = vld [vmem:[#allocation6 + $0x38] sm:$0xff]
    %v98 = vld [vmem:[#allocation6 + $0x40] sm:$0xff]
    %v99 = vld [vmem:[#allocation6 + $0x48] sm:$0xff]
    %v100 = vld [vmem:[#allocation6 + $0x50] sm:$0xff]
    %v101 = vld [vmem:[#allocation6 + $0x58] sm:$0xff]
    %v102 = vld [vmem:[#allocation6 + $0x60] sm:$0xff]
    %v103 = vld [vmem:[#allocation6 + $0x68] sm:$0xff]
    %v104 = vld [vmem:[#allocation6 + $0x70] sm:$0xff]
    %v105 = vld [vmem:[#allocation6 + $0x78] sm:$0xff]
    %v106 = vld [vmem:[#allocation6 + $0x80] sm:$0xff]
    %v107 = vld [vmem:[#allocation6 + $0x88] sm:$0xff]
    %v108 = vld [vmem:[#allocation6 + $0x90] sm:$0xff]
    %v109 = vld [vmem:[#allocation6 + $0x98] sm:$0xff]
    %v110 = vld [vmem:[#allocation6 + $0xa0] sm:$0xff]
    %v111 = vld [vmem:[#allocation6 + $0xa8] sm:$0xff]
    %v112 = vld [vmem:[#allocation6 + $0xb0] sm:$0xff]
    %v113 = vld [vmem:[#allocation6 + $0xb8] sm:$0xff]
    %v114 = vld [vmem:[#allocation6 + $0xc0] sm:$0xff]
    %v115 = vld [vmem:[#allocation6 + $0xc8] sm:$0xff]
    %v116 = vld [vmem:[#allocation6 + $0xd0] sm:$0xff]
    %v117 = vld [vmem:[#allocation6 + $0xd8] sm:$0xff]
    %v118 = vld [vmem:[#allocation6 + $0xe0] sm:$0xff]
    %v119 = vld [vmem:[#allocation6 + $0xe8] sm:$0xff]
    %v120 = vld [vmem:[#allocation6 + $0xf0] sm:$0xff]
    %v121 = vld [vmem:[#allocation6 + $0xf8] sm:$0xff]
    %v122 = vld [vmem:[#allocation6 + $0x100] sm:$0xff]
    %v123 = vld [vmem:[#allocation6 + $0x108] sm:$0xff]
    %v124 = vld [vmem:[#allocation6 + $0x110] sm:$0xff]
    %v125 = vld [vmem:[#allocation6 + $0x118] sm:$0xff]
    %v126 = vld [vmem:[#allocation6 + $0x120] sm:$0xff]
    %v127 = vld [vmem:[#allocation6 + $0x128] sm:$0xff]
    %v128 = vld [vmem:[#allocation6 + $0x130] sm:$0xff]
    %v129 = vld [vmem:[#allocation6 + $0x138] sm:$0xff]
    %v130 = vld [vmem:[#allocation6 + $0x140] sm:$0xff]
    %v131 = vld [vmem:[#allocation6 + $0x148] sm:$0xff]
    %v132 = vld [vmem:[#allocation6 + $0x150] sm:$0xff]
    %v133 = vld [vmem:[#allocation6 + $0x158] sm:$0xff]
    %v134 = vld [vmem:[#allocation6 + $0x160] sm:$0xff]
    %v135 = vld [vmem:[#allocation6 + $0x168] sm:$0xff]
    %v136 = vld [vmem:[#allocation6 + $0x170] sm:$0xff]
    %v137 = vld [vmem:[#allocation6 + $0x178] sm:$0xff]
    %v138 = vld [vmem:[#allocation6 + $0x180] sm:$0xff]
    %v139 = vld [vmem:[#allocation6 + $0x188] sm:$0xff]
    %v140 = vld [vmem:[#allocation6 + $0x190] sm:$0xff]
    %v141 = vld [vmem:[#allocation6 + $0x198] sm:$0xff]
    %v142 = vld [vmem:[#allocation6 + $0x1a0] sm:$0xff]
    %v143 = vld [vmem:[#allocation6 + $0x1a8] sm:$0xff]
    %v144 = vld [vmem:[#allocation6 + $0x1b0] sm:$0xff]
    %v145 = vld [vmem:[#allocation6 + $0x1b8] sm:$0xff]
    %v146 = vld [vmem:[#allocation6 + $0x1c0] sm:$0xff]
    %v147 = vld [vmem:[#allocation6 + $0x1c8] sm:$0xff]
    %v148 = vld [vmem:[#allocation6 + $0x1d0] sm:$0xff]
    %v149 = vld [vmem:[#allocation6 + $0x1d8] sm:$0xff]
    %v150 = vld [vmem:[#allocation6 + $0x1e0] sm:$0xff]
    %v151 = vld [vmem:[#allocation6 + $0x1e8] sm:$0xff]
    %v152 = vld [vmem:[#allocation6 + $0x1f0] sm:$0xff]
    %v153 = vld [vmem:[#allocation6 + $0x1f8] sm:$0xff]
    %v154 = vld [vmem:[%s2] sm:$0xf]
    %v155 = vld [vmem:[#allocation8] sm:$0xff]
    %v156 = vld [vmem:[#allocation8 + $0x8] sm:$0xff]
    %v157 = vld [vmem:[#allocation8 + $0x10] sm:$0xff]
    %v158 = vld [vmem:[#allocation8 + $0x18] sm:$0xff]
    %v159 = vld [vmem:[#allocation8 + $0x20] sm:$0xff]
    %v160 = vld [vmem:[#allocation8 + $0x28] sm:$0xff]
    %v161 = vld [vmem:[#allocation8 + $0x30] sm:$0xff]
    %v162 = vld [vmem:[#allocation8 + $0x38] sm:$0xff]
    %v163 = vld [vmem:[#allocation8 + $0x40] sm:$0xff]
    %v164 = vld [vmem:[#allocation8 + $0x48] sm:$0xff]
    %v165 = vld [vmem:[#allocation8 + $0x50] sm:$0xff]
    %v166 = vld [vmem:[#allocation8 + $0x58] sm:$0xff]
    %v167 = vld [vmem:[#allocation8 + $0x60] sm:$0xff]
    %v168 = vld [vmem:[#allocation8 + $0x68] sm:$0xff]
    %v169 = vld [vmem:[#allocation8 + $0x70] sm:$0xff]
    %v170 = vld [vmem:[#allocation8 + $0x78] sm:$0xff]
    %v171 = vld [vmem:[#allocation8 + $0x80] sm:$0xff]
    %v172 = vld [vmem:[#allocation8 + $0x88] sm:$0xff]
    %v173 = vld [vmem:[#allocation8 + $0x90] sm:$0xff]
    %v174 = vld [vmem:[#allocation8 + $0x98] sm:$0xff]
    %v175 = vld [vmem:[#allocation8 + $0xa0] sm:$0xff]
    %v176 = vld [vmem:[#allocation8 + $0xa8] sm:$0xff]
    %v177 = vld [vmem:[#allocation8 + $0xb0] sm:$0xff]
    %v178 = vld [vmem:[#allocation8 + $0xb8] sm:$0xff]
    %v179 = vld [vmem:[#allocation8 + $0xc0] sm:$0xff]
    %v180 = vld [vmem:[#allocation8 + $0xc8] sm:$0xff]
    %v181 = vld [vmem:[#allocation8 + $0xd0] sm:$0xff]
    %v182 = vld [vmem:[#allocation8 + $0xd8] sm:$0xff]
    %v183 = vld [vmem:[#allocation8 + $0xe0] sm:$0xff]
    %v184 = vld [vmem:[#allocation8 + $0xe8] sm:$0xff]
    %v185 = vld [vmem:[#allocation8 + $0xf0] sm:$0xff]
    %v186 = vld [vmem:[#allocation8 + $0xf8] sm:$0xff]
    %v187 = vld [vmem:[#allocation8 + $0x100] sm:$0xff]
    %v188 = vld [vmem:[#allocation8 + $0x108] sm:$0xff]
    %v189 = vld [vmem:[#allocation8 + $0x110] sm:$0xff]
    %v190 = vld [vmem:[#allocation8 + $0x118] sm:$0xff]
    %v191 = vld [vmem:[#allocation8 + $0x120] sm:$0xff]
    %v192 = vld [vmem:[#allocation8 + $0x128] sm:$0xff]
    %v193 = vld [vmem:[#allocation8 + $0x130] sm:$0xff]
    %v194 = vld [vmem:[#allocation8 + $0x138] sm:$0xff]
    %v195 = vld [vmem:[#allocation8 + $0x140] sm:$0xff]
    %v196 = vld [vmem:[#allocation8 + $0x148] sm:$0xff]
    %v197 = vld [vmem:[#allocation8 + $0x150] sm:$0xff]
    %v198 = vld [vmem:[#allocation8 + $0x158] sm:$0xff]
    %v199 = vld [vmem:[#allocation8 + $0x160] sm:$0xff]
    %v200 = vld [vmem:[#allocation8 + $0x168] sm:$0xff]
    %v201 = vld [vmem:[#allocation8 + $0x170] sm:$0xff]
    %v202 = vld [vmem:[#allocation8 + $0x178] sm:$0xff]
    %v203 = vld [vmem:[#allocation8 + $0x180] sm:$0xff]
    %v204 = vld [vmem:[#allocation8 + $0x188] sm:$0xff]
    %v205 = vld [vmem:[#allocation8 + $0x190] sm:$0xff]
    %v206 = vld [vmem:[#allocation8 + $0x198] sm:$0xff]
    %v207 = vld [vmem:[#allocation8 + $0x1a0] sm:$0xff]
    %v208 = vld [vmem:[#allocation8 + $0x1a8] sm:$0xff]
    %v209 = vld [vmem:[#allocation8 + $0x1b0] sm:$0xff]
    %v210 = vld [vmem:[#allocation8 + $0x1b8] sm:$0xff]
    %v211 = vld [vmem:[#allocation8 + $0x1c0] sm:$0xff]
    %v212 = vld [vmem:[#allocation8 + $0x1c8] sm:$0xff]
    %v213 = vld [vmem:[#allocation8 + $0x1d0] sm:$0xff]
    %v214 = vld [vmem:[#allocation8 + $0x1d8] sm:$0xff]
    %v215 = vld [vmem:[#allocation8 + $0x1e0] sm:$0xff]
    %v216 = vld [vmem:[#allocation8 + $0x1e8] sm:$0xff]
    %v217 = vld [vmem:[#allocation8 + $0x1f0] sm:$0xff]
    %v218 = vld [vmem:[#allocation8 + $0x1f8] sm:$0xff]
    %v219 = vld [vmem:[%s4] sm:$0x3]
    %v220 = vld [vmem:[#allocation9] sm:$0xf]
    %v221 = vld [vmem:[#allocation9 + $0x4] sm:$0xf]
    %v222 = vld [vmem:[#allocation9 + $0x8] sm:$0xf]
    %v223 = vld [vmem:[#allocation9 + $0xc] sm:$0xf]
    %v224 = vld [vmem:[#allocation9 + $0x10] sm:$0xf]
    %v225 = vld [vmem:[#allocation9 + $0x14] sm:$0xf]
    %v226 = vld [vmem:[#allocation9 + $0x18] sm:$0xf]
    %v227 = vld [vmem:[#allocation9 + $0x1c] sm:$0xf]
    %v228 = vld [vmem:[#allocation9 + $0x20] sm:$0xf]
    %v229 = vld [vmem:[#allocation9 + $0x24] sm:$0xf]
    %v230 = vld [vmem:[#allocation9 + $0x28] sm:$0xf]
    %v231 = vld [vmem:[#allocation9 + $0x2c] sm:$0xf]
    %v232 = vld [vmem:[#allocation9 + $0x30] sm:$0xf]
    %v233 = vld [vmem:[#allocation9 + $0x34] sm:$0xf]
    %v234 = vld [vmem:[#allocation9 + $0x38] sm:$0xf]
    %v235 = vld [vmem:[#allocation9 + $0x3c] sm:$0xf]
    %v236 = vld [vmem:[#allocation9 + $0x40] sm:$0xf]
    %v237 = vld [vmem:[#allocation9 + $0x44] sm:$0xf]
    %v238 = vld [vmem:[#allocation9 + $0x48] sm:$0xf]
    %v239 = vld [vmem:[#allocation9 + $0x4c] sm:$0xf]
    %v240 = vld [vmem:[#allocation9 + $0x50] sm:$0xf]
    %v241 = vld [vmem:[#allocation9 + $0x54] sm:$0xf]
    %v242 = vld [vmem:[#allocation9 + $0x58] sm:$0xf]
    %v243 = vld [vmem:[#allocation9 + $0x5c] sm:$0xf]
    %v244 = vld [vmem:[#allocation9 + $0x60] sm:$0xf]
    %v245 = vld [vmem:[#allocation9 + $0x64] sm:$0xf]
    %v246 = vld [vmem:[#allocation9 + $0x68] sm:$0xf]
    %v247 = vld [vmem:[#allocation9 + $0x6c] sm:$0xf]
    %v248 = vld [vmem:[#allocation9 + $0x70] sm:$0xf]
    %v249 = vld [vmem:[#allocation9 + $0x74] sm:$0xf]
    %v250 = vld [vmem:[#allocation9 + $0x78] sm:$0xf]
    %v251 = vld [vmem:[#allocation9 + $0x7c] sm:$0xf]
    %v252 = vld [vmem:[%s6] sm:$0x1]
    %v253 = vld [vmem:[%s7] sm:$0x1]
    %v254 = vld [vmem:[#allocation2] sm:$0x1]
    %v255 = vld [vmem:[#allocation3] sm:$0xff]
    %v257 = vlaneseq
    %v258 = vshrl.u32 %v257, 7
    %v259 = vsub.s32 0, %v258
    %v260 = vrot.slane %v154, %v259
    %v261 = vlaneseq
    %v262 = vshrl.u32 %v261, 7
    %v263 = vsub.s32 1, %v262
    %v264 = vrot.slane %v154, %v263
    %v265 = vlaneseq
    %v266 = vshrl.u32 %v265, 7
    %v267 = vsub.s32 2, %v266
    %v268 = vrot.slane %v154, %v267
    %v269 = vlaneseq
    %v270 = vshrl.u32 %v269, 7
    %v271 = vsub.s32 3, %v270
    %v272 = vrot.slane %v154, %v271
    %v278 = vunpack.c.l.b16 %v255
    %v279 = vunpack.c.h.b16 %v255
    %v280 = vpack.c.b16 %v278, %v278
    %v281 = vpack.c.b16 %v279, %v279
    %v348 = vunpack.c.l.b16 %v90
    %v349 = vunpack.c.h.b16 %v90
    %v350 = vunpack.c.l.b16 %v91
    %v351 = vunpack.c.h.b16 %v91
    %v352 = vunpack.c.l.b16 %v92
    %v353 = vunpack.c.h.b16 %v92
    %v354 = vunpack.c.l.b16 %v93
    %v355 = vunpack.c.h.b16 %v93
    %v356 = vunpack.c.l.b16 %v94
    %v357 = vunpack.c.h.b16 %v94
    %v358 = vunpack.c.l.b16 %v95
    %v359 = vunpack.c.h.b16 %v95
    %v360 = vunpack.c.l.b16 %v96
    %v361 = vunpack.c.h.b16 %v96
    %v362 = vunpack.c.l.b16 %v97
    %v363 = vunpack.c.h.b16 %v97
    %v364 = vunpack.c.l.b16 %v98
    %v365 = vunpack.c.h.b16 %v98
    %v366 = vunpack.c.l.b16 %v99
    %v367 = vunpack.c.h.b16 %v99
    %v368 = vunpack.c.l.b16 %v100
    %v369 = vunpack.c.h.b16 %v100
    %v370 = vunpack.c.l.b16 %v101
    %v371 = vunpack.c.h.b16 %v101
    %v372 = vunpack.c.l.b16 %v102
    %v373 = vunpack.c.h.b16 %v102
    %v374 = vunpack.c.l.b16 %v103
    %v375 = vunpack.c.h.b16 %v103
    %v376 = vunpack.c.l.b16 %v104
    %v377 = vunpack.c.h.b16 %v104
    %v378 = vunpack.c.l.b16 %v105
    %v379 = vunpack.c.h.b16 %v105
    %v380 = vunpack.c.l.b16 %v106
    %v381 = vunpack.c.h.b16 %v106
    %v382 = vunpack.c.l.b16 %v107
    %v383 = vunpack.c.h.b16 %v107
    %v384 = vunpack.c.l.b16 %v108
    %v385 = vunpack.c.h.b16 %v108
    %v386 = vunpack.c.l.b16 %v109
    %v387 = vunpack.c.h.b16 %v109
    %v388 = vunpack.c.l.b16 %v110
    %v389 = vunpack.c.h.b16 %v110
    %v390 = vunpack.c.l.b16 %v111
    %v391 = vunpack.c.h.b16 %v111
    %v392 = vunpack.c.l.b16 %v112
    %v393 = vunpack.c.h.b16 %v112
    %v394 = vunpack.c.l.b16 %v113
    %v395 = vunpack.c.h.b16 %v113
    %v396 = vunpack.c.l.b16 %v114
    %v397 = vunpack.c.h.b16 %v114
    %v398 = vunpack.c.l.b16 %v115
    %v399 = vunpack.c.h.b16 %v115
    %v400 = vunpack.c.l.b16 %v116
    %v401 = vunpack.c.h.b16 %v116
    %v402 = vunpack.c.l.b16 %v117
    %v403 = vunpack.c.h.b16 %v117
    %v404 = vunpack.c.l.b16 %v118
    %v405 = vunpack.c.h.b16 %v118
    %v406 = vunpack.c.l.b16 %v119
    %v407 = vunpack.c.h.b16 %v119
    %v408 = vunpack.c.l.b16 %v120
    %v409 = vunpack.c.h.b16 %v120
    %v410 = vunpack.c.l.b16 %v121
    %v411 = vunpack.c.h.b16 %v121
    %v412 = vunpack.c.l.b16 %v122
    %v413 = vunpack.c.h.b16 %v122
    %v414 = vunpack.c.l.b16 %v123
    %v415 = vunpack.c.h.b16 %v123
    %v416 = vunpack.c.l.b16 %v124
    %v417 = vunpack.c.h.b16 %v124
    %v418 = vunpack.c.l.b16 %v125
    %v419 = vunpack.c.h.b16 %v125
    %v420 = vunpack.c.l.b16 %v126
    %v421 = vunpack.c.h.b16 %v126
    %v422 = vunpack.c.l.b16 %v127
    %v423 = vunpack.c.h.b16 %v127
    %v424 = vunpack.c.l.b16 %v128
    %v425 = vunpack.c.h.b16 %v128
    %v426 = vunpack.c.l.b16 %v129
    %v427 = vunpack.c.h.b16 %v129
    %v428 = vunpack.c.l.b16 %v130
    %v429 = vunpack.c.h.b16 %v130
    %v430 = vunpack.c.l.b16 %v131
    %v431 = vunpack.c.h.b16 %v131
    %v432 = vunpack.c.l.b16 %v132
    %v433 = vunpack.c.h.b16 %v132
    %v434 = vunpack.c.l.b16 %v133
    %v435 = vunpack.c.h.b16 %v133
    %v436 = vunpack.c.l.b16 %v134
    %v437 = vunpack.c.h.b16 %v134
    %v438 = vunpack.c.l.b16 %v135
    %v439 = vunpack.c.h.b16 %v135
    %v440 = vunpack.c.l.b16 %v136
    %v441 = vunpack.c.h.b16 %v136
    %v442 = vunpack.c.l.b16 %v137
    %v443 = vunpack.c.h.b16 %v137
    %v444 = vunpack.c.l.b16 %v138
    %v445 = vunpack.c.h.b16 %v138
    %v446 = vunpack.c.l.b16 %v139
    %v447 = vunpack.c.h.b16 %v139
    %v448 = vunpack.c.l.b16 %v140
    %v449 = vunpack.c.h.b16 %v140
    %v450 = vunpack.c.l.b16 %v141
    %v451 = vunpack.c.h.b16 %v141
    %v452 = vunpack.c.l.b16 %v142
    %v453 = vunpack.c.h.b16 %v142
    %v454 = vunpack.c.l.b16 %v143
    %v455 = vunpack.c.h.b16 %v143
    %v456 = vunpack.c.l.b16 %v144
    %v457 = vunpack.c.h.b16 %v144
    %v458 = vunpack.c.l.b16 %v145
    %v459 = vunpack.c.h.b16 %v145
    %v460 = vunpack.c.l.b16 %v146
    %v461 = vunpack.c.h.b16 %v146
    %v462 = vunpack.c.l.b16 %v147
    %v463 = vunpack.c.h.b16 %v147
    %v464 = vunpack.c.l.b16 %v148
    %v465 = vunpack.c.h.b16 %v148
    %v466 = vunpack.c.l.b16 %v149
    %v467 = vunpack.c.h.b16 %v149
    %v468 = vunpack.c.l.b16 %v150
    %v469 = vunpack.c.h.b16 %v150
    %v470 = vunpack.c.l.b16 %v151
    %v471 = vunpack.c.h.b16 %v151
    %v472 = vunpack.c.l.b16 %v152
    %v473 = vunpack.c.h.b16 %v152
    %v474 = vunpack.c.l.b16 %v153
    %v475 = vunpack.c.h.b16 %v153
    %v476 = vpack.c.b16 %v352, %v348
    %v477 = vpack.c.b16 %v353, %v349
    %v478 = vpack.c.b16 %v354, %v350
    %v479 = vpack.c.b16 %v355, %v351
    %v480 = vpack.c.b16 %v360, %v356
    %v481 = vpack.c.b16 %v361, %v357
    %v482 = vpack.c.b16 %v362, %v358
    %v483 = vpack.c.b16 %v363, %v359
    %v484 = vpack.c.b16 %v368, %v364
    %v485 = vpack.c.b16 %v369, %v365
    %v486 = vpack.c.b16 %v370, %v366
    %v487 = vpack.c.b16 %v371, %v367
    %v488 = vpack.c.b16 %v376, %v372
    %v489 = vpack.c.b16 %v377, %v373
    %v490 = vpack.c.b16 %v378, %v374
    %v491 = vpack.c.b16 %v379, %v375
    %v492 = vpack.c.b16 %v384, %v380
    %v493 = vpack.c.b16 %v385, %v381
    %v494 = vpack.c.b16 %v386, %v382
    %v495 = vpack.c.b16 %v387, %v383
    %v496 = vpack.c.b16 %v392, %v388
    %v497 = vpack.c.b16 %v393, %v389
    %v498 = vpack.c.b16 %v394, %v390
    %v499 = vpack.c.b16 %v395, %v391
    %v500 = vpack.c.b16 %v400, %v396
    %v501 = vpack.c.b16 %v401, %v397
    %v502 = vpack.c.b16 %v402, %v398
    %v503 = vpack.c.b16 %v403, %v399
    %v504 = vpack.c.b16 %v408, %v404
    %v505 = vpack.c.b16 %v409, %v405
    %v506 = vpack.c.b16 %v410, %v406
    %v507 = vpack.c.b16 %v411, %v407
    %v508 = vpack.c.b16 %v416, %v412
    %v509 = vpack.c.b16 %v417, %v413
    %v510 = vpack.c.b16 %v418, %v414
    %v511 = vpack.c.b16 %v419, %v415
    %v512 = vpack.c.b16 %v424, %v420
    %v513 = vpack.c.b16 %v425, %v421
    %v514 = vpack.c.b16 %v426, %v422
    %v515 = vpack.c.b16 %v427, %v423
    %v516 = vpack.c.b16 %v432, %v428
    %v517 = vpack.c.b16 %v433, %v429
    %v518 = vpack.c.b16 %v434, %v430
    %v519 = vpack.c.b16 %v435, %v431
    %v520 = vpack.c.b16 %v440, %v436
    %v521 = vpack.c.b16 %v441, %v437
    %v522 = vpack.c.b16 %v442, %v438
    %v523 = vpack.c.b16 %v443, %v439
    %v524 = vpack.c.b16 %v448, %v444
    %v525 = vpack.c.b16 %v449, %v445
    %v526 = vpack.c.b16 %v450, %v446
    %v527 = vpack.c.b16 %v451, %v447
    %v528 = vpack.c.b16 %v456, %v452
    %v529 = vpack.c.b16 %v457, %v453
    %v530 = vpack.c.b16 %v458, %v454
    %v531 = vpack.c.b16 %v459, %v455
    %v532 = vpack.c.b16 %v464, %v460
    %v533 = vpack.c.b16 %v465, %v461
    %v534 = vpack.c.b16 %v466, %v462
    %v535 = vpack.c.b16 %v467, %v463
    %v536 = vpack.c.b16 %v472, %v468
    %v537 = vpack.c.b16 %v473, %v469
    %v538 = vpack.c.b16 %v474, %v470
    %v539 = vpack.c.b16 %v475, %v471
    %604 = vmatprep.subr.bf16.mxu0 %v505
    %605 = vmatpush1.bf16.msra.mxu0 %v504
    %606 = vmatprep.subr.bf16.mxu0 %v501
    %607 = vmatpush1.bf16.msra.mxu0 %v500
    %608 = vmatprep.subr.bf16.mxu0 %v497
    %609 = vmatpush1.bf16.msra.mxu0 %v496
    %610 = vmatprep.subr.bf16.mxu0 %v493
    %611 = vmatpush1.bf16.msra.mxu0 %v492
    %612 = vmatprep.subr.bf16.mxu0 %v489
    %613 = vmatpush1.bf16.msra.mxu0 %v488
    %614 = vmatprep.subr.bf16.mxu0 %v485
    %615 = vmatpush1.bf16.msra.mxu0 %v484
    %616 = vmatprep.subr.bf16.mxu0 %v481
    %617 = vmatpush1.bf16.msra.mxu0 %v480
    %618 = vmatprep.subr.bf16.mxu0 %v477
    %619 = vmatpush1.bf16.msra.mxu0 %v476
    %620 = vmatprep.subr.bf16.mxu0 %v537
    %621 = vmatpush2.bf16.msra.mxu0 %v536
    %622 = vmatprep.subr.bf16.mxu0 %v533
    %623 = vmatpush2.bf16.msra.mxu0 %v532
    %624 = vmatprep.subr.bf16.mxu0 %v529
    %625 = vmatpush2.bf16.msra.mxu0 %v528
    %626 = vmatprep.subr.bf16.mxu0 %v525
    %627 = vmatpush2.bf16.msra.mxu0 %v524
    %628 = vmatprep.subr.bf16.mxu0 %v521
    %629 = vmatpush2.bf16.msra.mxu0 %v520
    %630 = vmatprep.subr.bf16.mxu0 %v517
    %631 = vmatpush2.bf16.msra.mxu0 %v516
    %632 = vmatprep.subr.bf16.mxu0 %v513
    %633 = vmatpush2.bf16.msra.mxu0 %v512
    %634 = vmatprep.subr.bf16.mxu0 %v509
    %635 = vmatpush2.bf16.msra.mxu0 %v508
    %636 = vmatprep.mubr.bf16.mxu0 %v281
    %637 = vmatmul.mubr.bf16.gmra.mxu0 %v280
    %v638 = vpop.f32.mrf.mxu0
    %v639 = vadd.f32 %v260, %v638
    %v640 = vpop.f32.mrf.mxu0
    %v641 = vadd.f32 %v264, %v640
    %v642 = vpop.f32.mrf.mxu0
    %v643 = vpop.f32.mrf.mxu0
    %644 = vdwg.mxu0
    %645 = vmatprep.subr.bf16.mxu0 %v507
    %646 = vmatpush1.bf16.msra.mxu0 %v506
    %647 = vmatprep.subr.bf16.mxu0 %v503
    %648 = vmatpush1.bf16.msra.mxu0 %v502
    %649 = vmatprep.subr.bf16.mxu0 %v499
    %650 = vmatpush1.bf16.msra.mxu0 %v498
    %651 = vmatprep.subr.bf16.mxu0 %v495
    %652 = vmatpush1.bf16.msra.mxu0 %v494
    %653 = vmatprep.subr.bf16.mxu0 %v491
    %654 = vmatpush1.bf16.msra.mxu0 %v490
    %655 = vmatprep.subr.bf16.mxu0 %v487
    %656 = vmatpush1.bf16.msra.mxu0 %v486
    %657 = vmatprep.subr.bf16.mxu0 %v483
    %658 = vmatpush1.bf16.msra.mxu0 %v482
    %659 = vmatprep.subr.bf16.mxu0 %v479
    %660 = vmatpush1.bf16.msra.mxu0 %v478
    %661 = vmatprep.subr.bf16.mxu0 %v539
    %662 = vmatpush2.bf16.msra.mxu0 %v538
    %663 = vmatprep.subr.bf16.mxu0 %v535
    %664 = vmatpush2.bf16.msra.mxu0 %v534
    %665 = vmatprep.subr.bf16.mxu0 %v531
    %666 = vmatpush2.bf16.msra.mxu0 %v530
    %667 = vmatprep.subr.bf16.mxu0 %v527
    %668 = vmatpush2.bf16.msra.mxu0 %v526
    %669 = vmatprep.subr.bf16.mxu0 %v523
    %670 = vmatpush2.bf16.msra.mxu0 %v522
    %671 = vmatprep.subr.bf16.mxu0 %v519
    %672 = vmatpush2.bf16.msra.mxu0 %v518
    %673 = vmatprep.subr.bf16.mxu0 %v515
    %674 = vmatpush2.bf16.msra.mxu0 %v514
    %675 = vmatprep.subr.bf16.mxu0 %v511
    %676 = vmatpush2.bf16.msra.mxu0 %v510
    %677 = vmatprep.mubr.bf16.mxu0 %v281
    %678 = vmatmul.mubr.bf16.gmra.mxu0 %v280
    %v679 = vpop.f32.mrf.mxu0
    %v680 = vadd.f32 %v268, %v679
    %v681 = vpop.f32.mrf.mxu0
    %v682 = vadd.f32 %v272, %v681
    %v683 = vpop.f32.mrf.mxu0
    %v684 = vpop.f32.mrf.mxu0
    %685 = vdwg.mxu0
    %v686 = vpack.c.bf16 %v639, %v639
    %v687 = vpack.c.bf16 %v641, %v641
    %v688 = vpack.c.bf16 %v680, %v680
    %v689 = vpack.c.bf16 %v682, %v682
    %v690 = vmul.bf16 %v686, 1045249613
    %v691 = vmul.bf16 %v687, 1045249613
    %v692 = vmul.bf16 %v688, 1045249613
    %v693 = vmul.bf16 %v689, 1045249613
    %v694 = vmax.bf16 %v686, %v690
    %v695 = vmax.bf16 %v687, %v691
    %v696 = vmax.bf16 %v688, %v692
    %v697 = vmax.bf16 %v689, %v693
    %v699 = vlaneseq
    %v700 = vshrl.u32 %v699, 7
    %v701 = vsub.s32 0, %v700
    %v702 = vrot.slane %v219, %v701
    %v703 = vlaneseq
    %v704 = vshrl.u32 %v703, 7
    %v705 = vsub.s32 1, %v704
    %v706 = vrot.slane %v219, %v705
    %v773 = vunpack.c.l.b16 %v155
    %v774 = vunpack.c.h.b16 %v155
    %v775 = vunpack.c.l.b16 %v156
    %v776 = vunpack.c.h.b16 %v156
    %v777 = vunpack.c.l.b16 %v157
    %v778 = vunpack.c.h.b16 %v157
    %v779 = vunpack.c.l.b16 %v158
    %v780 = vunpack.c.h.b16 %v158
    %v781 = vunpack.c.l.b16 %v159
    %v782 = vunpack.c.h.b16 %v159
    %v783 = vunpack.c.l.b16 %v160
    %v784 = vunpack.c.h.b16 %v160
    %v785 = vunpack.c.l.b16 %v161
    %v786 = vunpack.c.h.b16 %v161
    %v787 = vunpack.c.l.b16 %v162
    %v788 = vunpack.c.h.b16 %v162
    %v789 = vunpack.c.l.b16 %v163
    %v790 = vunpack.c.h.b16 %v163
    %v791 = vunpack.c.l.b16 %v164
    %v792 = vunpack.c.h.b16 %v164
    %v793 = vunpack.c.l.b16 %v165
    %v794 = vunpack.c.h.b16 %v165
    %v795 = vunpack.c.l.b16 %v166
    %v796 = vunpack.c.h.b16 %v166
    %v797 = vunpack.c.l.b16 %v167
    %v798 = vunpack.c.h.b16 %v167
    %v799 = vunpack.c.l.b16 %v168
    %v800 = vunpack.c.h.b16 %v168
    %v801 = vunpack.c.l.b16 %v169
    %v802 = vunpack.c.h.b16 %v169
    %v803 = vunpack.c.l.b16 %v170
    %v804 = vunpack.c.h.b16 %v170
    %v805 = vunpack.c.l.b16 %v171
    %v806 = vunpack.c.h.b16 %v171
    %v807 = vunpack.c.l.b16 %v172
    %v808 = vunpack.c.h.b16 %v172
    %v809 = vunpack.c.l.b16 %v173
    %v810 = vunpack.c.h.b16 %v173
    %v811 = vunpack.c.l.b16 %v174
    %v812 = vunpack.c.h.b16 %v174
    %v813 = vunpack.c.l.b16 %v175
    %v814 = vunpack.c.h.b16 %v175
    %v815 = vunpack.c.l.b16 %v176
    %v816 = vunpack.c.h.b16 %v176
    %v817 = vunpack.c.l.b16 %v177
    %v818 = vunpack.c.h.b16 %v177
    %v819 = vunpack.c.l.b16 %v178
    %v820 = vunpack.c.h.b16 %v178
    %v821 = vunpack.c.l.b16 %v179
    %v822 = vunpack.c.h.b16 %v179
    %v823 = vunpack.c.l.b16 %v180
    %v824 = vunpack.c.h.b16 %v180
    %v825 = vunpack.c.l.b16 %v181
    %v826 = vunpack.c.h.b16 %v181
    %v827 = vunpack.c.l.b16 %v182
    %v828 = vunpack.c.h.b16 %v182
    %v829 = vunpack.c.l.b16 %v183
    %v830 = vunpack.c.h.b16 %v183
    %v831 = vunpack.c.l.b16 %v184
    %v832 = vunpack.c.h.b16 %v184
    %v833 = vunpack.c.l.b16 %v185
    %v834 = vunpack.c.h.b16 %v185
    %v835 = vunpack.c.l.b16 %v186
    %v836 = vunpack.c.h.b16 %v186
    %v837 = vunpack.c.l.b16 %v187
    %v838 = vunpack.c.h.b16 %v187
    %v839 = vunpack.c.l.b16 %v188
    %v840 = vunpack.c.h.b16 %v188
    %v841 = vunpack.c.l.b16 %v189
    %v842 = vunpack.c.h.b16 %v189
    %v843 = vunpack.c.l.b16 %v190
    %v844 = vunpack.c.h.b16 %v190
    %v845 = vunpack.c.l.b16 %v191
    %v846 = vunpack.c.h.b16 %v191
    %v847 = vunpack.c.l.b16 %v192
    %v848 = vunpack.c.h.b16 %v192
    %v849 = vunpack.c.l.b16 %v193
    %v850 = vunpack.c.h.b16 %v193
    %v851 = vunpack.c.l.b16 %v194
    %v852 = vunpack.c.h.b16 %v194
    %v853 = vunpack.c.l.b16 %v195
    %v854 = vunpack.c.h.b16 %v195
    %v855 = vunpack.c.l.b16 %v196
    %v856 = vunpack.c.h.b16 %v196
    %v857 = vunpack.c.l.b16 %v197
    %v858 = vunpack.c.h.b16 %v197
    %v859 = vunpack.c.l.b16 %v198
    %v860 = vunpack.c.h.b16 %v198
    %v861 = vunpack.c.l.b16 %v199
    %v862 = vunpack.c.h.b16 %v199
    %v863 = vunpack.c.l.b16 %v200
    %v864 = vunpack.c.h.b16 %v200
    %v865 = vunpack.c.l.b16 %v201
    %v866 = vunpack.c.h.b16 %v201
    %v867 = vunpack.c.l.b16 %v202
    %v868 = vunpack.c.h.b16 %v202
    %v869 = vunpack.c.l.b16 %v203
    %v870 = vunpack.c.h.b16 %v203
    %v871 = vunpack.c.l.b16 %v204
    %v872 = vunpack.c.h.b16 %v204
    %v873 = vunpack.c.l.b16 %v205
    %v874 = vunpack.c.h.b16 %v205
    %v875 = vunpack.c.l.b16 %v206
    %v876 = vunpack.c.h.b16 %v206
    %v877 = vunpack.c.l.b16 %v207
    %v878 = vunpack.c.h.b16 %v207
    %v879 = vunpack.c.l.b16 %v208
    %v880 = vunpack.c.h.b16 %v208
    %v881 = vunpack.c.l.b16 %v209
    %v882 = vunpack.c.h.b16 %v209
    %v883 = vunpack.c.l.b16 %v210
    %v884 = vunpack.c.h.b16 %v210
    %v885 = vunpack.c.l.b16 %v211
    %v886 = vunpack.c.h.b16 %v211
    %v887 = vunpack.c.l.b16 %v212
    %v888 = vunpack.c.h.b16 %v212
    %v889 = vunpack.c.l.b16 %v213
    %v890 = vunpack.c.h.b16 %v213
    %v891 = vunpack.c.l.b16 %v214
    %v892 = vunpack.c.h.b16 %v214
    %v893 = vunpack.c.l.b16 %v215
    %v894 = vunpack.c.h.b16 %v215
    %v895 = vunpack.c.l.b16 %v216
    %v896 = vunpack.c.h.b16 %v216
    %v897 = vunpack.c.l.b16 %v217
    %v898 = vunpack.c.h.b16 %v217
    %v899 = vunpack.c.l.b16 %v218
    %v900 = vunpack.c.h.b16 %v218
    %v901 = vpack.c.b16 %v775, %v773
    %v902 = vpack.c.b16 %v776, %v774
    %v903 = vpack.c.b16 %v779, %v777
    %v904 = vpack.c.b16 %v780, %v778
    %v905 = vpack.c.b16 %v783, %v781
    %v906 = vpack.c.b16 %v784, %v782
    %v907 = vpack.c.b16 %v787, %v785
    %v908 = vpack.c.b16 %v788, %v786
    %v909 = vpack.c.b16 %v791, %v789
    %v910 = vpack.c.b16 %v792, %v790
    %v911 = vpack.c.b16 %v795, %v793
    %v912 = vpack.c.b16 %v796, %v794
    %v913 = vpack.c.b16 %v799, %v797
    %v914 = vpack.c.b16 %v800, %v798
    %v915 = vpack.c.b16 %v803, %v801
    %v916 = vpack.c.b16 %v804, %v802
    %v917 = vpack.c.b16 %v807, %v805
    %v918 = vpack.c.b16 %v808, %v806
    %v919 = vpack.c.b16 %v811, %v809
    %v920 = vpack.c.b16 %v812, %v810
    %v921 = vpack.c.b16 %v815, %v813
    %v922 = vpack.c.b16 %v816, %v814
    %v923 = vpack.c.b16 %v819, %v817
    %v924 = vpack.c.b16 %v820, %v818
    %v925 = vpack.c.b16 %v823, %v821
    %v926 = vpack.c.b16 %v824, %v822
    %v927 = vpack.c.b16 %v827, %v825
    %v928 = vpack.c.b16 %v828, %v826
    %v929 = vpack.c.b16 %v831, %v829
    %v930 = vpack.c.b16 %v832, %v830
    %v931 = vpack.c.b16 %v835, %v833
    %v932 = vpack.c.b16 %v836, %v834
    %v933 = vpack.c.b16 %v839, %v837
    %v934 = vpack.c.b16 %v840, %v838
    %v935 = vpack.c.b16 %v843, %v841
    %v936 = vpack.c.b16 %v844, %v842
    %v937 = vpack.c.b16 %v847, %v845
    %v938 = vpack.c.b16 %v848, %v846
    %v939 = vpack.c.b16 %v851, %v849
    %v940 = vpack.c.b16 %v852, %v850
    %v941 = vpack.c.b16 %v855, %v853
    %v942 = vpack.c.b16 %v856, %v854
    %v943 = vpack.c.b16 %v859, %v857
    %v944 = vpack.c.b16 %v860, %v858
    %v945 = vpack.c.b16 %v863, %v861
    %v946 = vpack.c.b16 %v864, %v862
    %v947 = vpack.c.b16 %v867, %v865
    %v948 = vpack.c.b16 %v868, %v866
    %v949 = vpack.c.b16 %v871, %v869
    %v950 = vpack.c.b16 %v872, %v870
    %v951 = vpack.c.b16 %v875, %v873
    %v952 = vpack.c.b16 %v876, %v874
    %v953 = vpack.c.b16 %v879, %v877
    %v954 = vpack.c.b16 %v880, %v878
    %v955 = vpack.c.b16 %v883, %v881
    %v956 = vpack.c.b16 %v884, %v882
    %v957 = vpack.c.b16 %v887, %v885
    %v958 = vpack.c.b16 %v888, %v886
    %v959 = vpack.c.b16 %v891, %v889
    %v960 = vpack.c.b16 %v892, %v890
    %v961 = vpack.c.b16 %v895, %v893
    %v962 = vpack.c.b16 %v896, %v894
    %v963 = vpack.c.b16 %v899, %v897
    %v964 = vpack.c.b16 %v900, %v898
    %1029 = vmatprep.subr.bf16.mxu0 %v916
    %1030 = vmatpush1.bf16.msra.mxu0 %v915
    %1031 = vmatprep.subr.bf16.mxu0 %v914
    %1032 = vmatpush1.bf16.msra.mxu0 %v913
    %1033 = vmatprep.subr.bf16.mxu0 %v912
    %1034 = vmatpush1.bf16.msra.mxu0 %v911
    %1035 = vmatprep.subr.bf16.mxu0 %v910
    %1036 = vmatpush1.bf16.msra.mxu0 %v909
    %1037 = vmatprep.subr.bf16.mxu0 %v908
    %1038 = vmatpush1.bf16.msra.mxu0 %v907
    %1039 = vmatprep.subr.bf16.mxu0 %v906
    %1040 = vmatpush1.bf16.msra.mxu0 %v905
    %1041 = vmatprep.subr.bf16.mxu0 %v904
    %1042 = vmatpush1.bf16.msra.mxu0 %v903
    %1043 = vmatprep.subr.bf16.mxu0 %v902
    %1044 = vmatpush1.bf16.msra.mxu0 %v901
    %1045 = vmatprep.subr.bf16.mxu0 %v932
    %1046 = vmatpush2.bf16.msra.mxu0 %v931
    %1047 = vmatprep.subr.bf16.mxu0 %v930
    %1048 = vmatpush2.bf16.msra.mxu0 %v929
    %1049 = vmatprep.subr.bf16.mxu0 %v928
    %1050 = vmatpush2.bf16.msra.mxu0 %v927
    %1051 = vmatprep.subr.bf16.mxu0 %v926
    %1052 = vmatpush2.bf16.msra.mxu0 %v925
    %1053 = vmatprep.subr.bf16.mxu0 %v924
    %1054 = vmatpush2.bf16.msra.mxu0 %v923
    %1055 = vmatprep.subr.bf16.mxu0 %v922
    %1056 = vmatpush2.bf16.msra.mxu0 %v921
    %1057 = vmatprep.subr.bf16.mxu0 %v920
    %1058 = vmatpush2.bf16.msra.mxu0 %v919
    %1059 = vmatprep.subr.bf16.mxu0 %v918
    %1060 = vmatpush2.bf16.msra.mxu0 %v917
    %1061 = vmatprep.mubr.bf16.mxu0 %v695
    %1062 = vmatmul.mubr.bf16.gmra.mxu0 %v694
    %v1063 = vpop.f32.mrf.mxu0
    %v1064 = vadd.f32 %v702, %v1063
    %v1065 = vpop.f32.mrf.mxu0
    %v1066 = vadd.f32 %v706, %v1065
    %v1067 = vpop.f32.mrf.mxu0
    %v1068 = vpop.f32.mrf.mxu0
    %1069 = vdwg.mxu0
    %1070 = vmatprep.subr.bf16.mxu0 %v948
    %1071 = vmatpush1.bf16.msra.mxu0 %v947
    %1072 = vmatprep.subr.bf16.mxu0 %v946
    %1073 = vmatpush1.bf16.msra.mxu0 %v945
    %1074 = vmatprep.subr.bf16.mxu0 %v944
    %1075 = vmatpush1.bf16.msra.mxu0 %v943
    %1076 = vmatprep.subr.bf16.mxu0 %v942
    %1077 = vmatpush1.bf16.msra.mxu0 %v941
    %1078 = vmatprep.subr.bf16.mxu0 %v940
    %1079 = vmatpush1.bf16.msra.mxu0 %v939
    %1080 = vmatprep.subr.bf16.mxu0 %v938
    %1081 = vmatpush1.bf16.msra.mxu0 %v937
    %1082 = vmatprep.subr.bf16.mxu0 %v936
    %1083 = vmatpush1.bf16.msra.mxu0 %v935
    %1084 = vmatprep.subr.bf16.mxu0 %v934
    %1085 = vmatpush1.bf16.msra.mxu0 %v933
    %1086 = vmatprep.subr.bf16.mxu0 %v964
    %1087 = vmatpush2.bf16.msra.mxu0 %v963
    %1088 = vmatprep.subr.bf16.mxu0 %v962
    %1089 = vmatpush2.bf16.msra.mxu0 %v961
    %1090 = vmatprep.subr.bf16.mxu0 %v960
    %1091 = vmatpush2.bf16.msra.mxu0 %v959
    %1092 = vmatprep.subr.bf16.mxu0 %v958
    %1093 = vmatpush2.bf16.msra.mxu0 %v957
    %1094 = vmatprep.subr.bf16.mxu0 %v956
    %1095 = vmatpush2.bf16.msra.mxu0 %v955
    %1096 = vmatprep.subr.bf16.mxu0 %v954
    %1097 = vmatpush2.bf16.msra.mxu0 %v953
    %1098 = vmatprep.subr.bf16.mxu0 %v952
    %1099 = vmatpush2.bf16.msra.mxu0 %v951
    %1100 = vmatprep.subr.bf16.mxu0 %v950
    %1101 = vmatpush2.bf16.msra.mxu0 %v949
    %1102 = vmatprep.mubr.bf16.mxu0 %v697
    %1103 = vmatmul.mubr.bf16.gmra.mxu0 %v696
    %v1104 = vpop.f32.mrf.mxu0
    %v1105 = vadd.f32 %v1064, %v1104
    %v1106 = vpop.f32.mrf.mxu0
    %v1107 = vadd.f32 %v1066, %v1106
    %v1108 = vpop.f32.mrf.mxu0
    %v1109 = vpop.f32.mrf.mxu0
    %1110 = vdwg.mxu0
    %v1111 = vpack.c.bf16 %v1105, %v1105
    %v1112 = vpack.c.bf16 %v1107, %v1107
    %v1113 = vmul.bf16 %v1111, 1045249613
    %v1114 = vmul.bf16 %v1112, 1045249613
    %v1115 = vmax.bf16 %v1111, %v1113
    %v1116 = vmax.bf16 %v1112, %v1114
    %v1118 = vlaneseq
    %v1119 = vshrl.u32 %v1118, 7
    %v1120 = vsub.s32 0, %v1119
    %v1121 = vrot.slane %v252, %v1120
    %v1155 = vunpack.c.l.b16 %v220
    %v1156 = vunpack.c.l.b16 %v221
    %v1157 = vunpack.c.l.b16 %v222
    %v1158 = vunpack.c.l.b16 %v223
    %v1159 = vunpack.c.l.b16 %v224
    %v1160 = vunpack.c.l.b16 %v225
    %v1161 = vunpack.c.l.b16 %v226
    %v1162 = vunpack.c.l.b16 %v227
    %v1163 = vunpack.c.l.b16 %v228
    %v1164 = vunpack.c.l.b16 %v229
    %v1165 = vunpack.c.l.b16 %v230
    %v1166 = vunpack.c.l.b16 %v231
    %v1167 = vunpack.c.l.b16 %v232
    %v1168 = vunpack.c.l.b16 %v233
    %v1169 = vunpack.c.l.b16 %v234
    %v1170 = vunpack.c.l.b16 %v235
    %v1171 = vunpack.c.l.b16 %v236
    %v1172 = vunpack.c.l.b16 %v237
    %v1173 = vunpack.c.l.b16 %v238
    %v1174 = vunpack.c.l.b16 %v239
    %v1175 = vunpack.c.l.b16 %v240
    %v1176 = vunpack.c.l.b16 %v241
    %v1177 = vunpack.c.l.b16 %v242
    %v1178 = vunpack.c.l.b16 %v243
    %v1179 = vunpack.c.l.b16 %v244
    %v1180 = vunpack.c.l.b16 %v245
    %v1181 = vunpack.c.l.b16 %v246
    %v1182 = vunpack.c.l.b16 %v247
    %v1183 = vunpack.c.l.b16 %v248
    %v1184 = vunpack.c.l.b16 %v249
    %v1185 = vunpack.c.l.b16 %v250
    %v1186 = vunpack.c.l.b16 %v251
    %v1187 = vpack.c.b16 %v1156, %v1155
    %v1188 = vpack.c.b16 %v1158, %v1157
    %v1189 = vpack.c.b16 %v1160, %v1159
    %v1190 = vpack.c.b16 %v1162, %v1161
    %v1191 = vpack.c.b16 %v1164, %v1163
    %v1192 = vpack.c.b16 %v1166, %v1165
    %v1193 = vpack.c.b16 %v1168, %v1167
    %v1194 = vpack.c.b16 %v1170, %v1169
    %v1195 = vpack.c.b16 %v1172, %v1171
    %v1196 = vpack.c.b16 %v1174, %v1173
    %v1197 = vpack.c.b16 %v1176, %v1175
    %v1198 = vpack.c.b16 %v1178, %v1177
    %v1199 = vpack.c.b16 %v1180, %v1179
    %v1200 = vpack.c.b16 %v1182, %v1181
    %v1201 = vpack.c.b16 %v1184, %v1183
    %v1202 = vpack.c.b16 %v1186, %v1185
    %1219 = vmatprep.subr.bf16.mxu0 0
    %1220 = vmatpush1.bf16.msra.mxu0 %v1194
    %1221 = vmatprep.subr.bf16.mxu0 0
    %1222 = vmatpush1.bf16.msra.mxu0 %v1193
    %1223 = vmatprep.subr.bf16.mxu0 0
    %1224 = vmatpush1.bf16.msra.mxu0 %v1192
    %1225 = vmatprep.subr.bf16.mxu0 0
    %1226 = vmatpush1.bf16.msra.mxu0 %v1191
    %1227 = vmatprep.subr.bf16.mxu0 0
    %1228 = vmatpush1.bf16.msra.mxu0 %v1190
    %1229 = vmatprep.subr.bf16.mxu0 0
    %1230 = vmatpush1.bf16.msra.mxu0 %v1189
    %1231 = vmatprep.subr.bf16.mxu0 0
    %1232 = vmatpush1.bf16.msra.mxu0 %v1188
    %1233 = vmatprep.subr.bf16.mxu0 0
    %1234 = vmatpush1.bf16.msra.mxu0 %v1187
    %1235 = vmatprep.subr.bf16.mxu0 0
    %1236 = vmatpush2.bf16.msra.mxu0 %v1202
    %1237 = vmatprep.subr.bf16.mxu0 0
    %1238 = vmatpush2.bf16.msra.mxu0 %v1201
    %1239 = vmatprep.subr.bf16.mxu0 0
    %1240 = vmatpush2.bf16.msra.mxu0 %v1200
    %1241 = vmatprep.subr.bf16.mxu0 0
    %1242 = vmatpush2.bf16.msra.mxu0 %v1199
    %1243 = vmatprep.subr.bf16.mxu0 0
    %1244 = vmatpush2.bf16.msra.mxu0 %v1198
    %1245 = vmatprep.subr.bf16.mxu0 0
    %1246 = vmatpush2.bf16.msra.mxu0 %v1197
    %1247 = vmatprep.subr.bf16.mxu0 0
    %1248 = vmatpush2.bf16.msra.mxu0 %v1196
    %1249 = vmatprep.subr.bf16.mxu0 0
    %1250 = vmatpush2.bf16.msra.mxu0 %v1195
    %1251 = vmatprep.mubr.bf16.mxu0 %v1116
    %1252 = vmatmul.mubr.bf16.gmra.mxu0 %v1115
    %v1253 = vpop.f32.mrf.mxu0
    %v1254 = vadd.f32 %v1121, %v1253
    %v1255 = vpop.f32.mrf.mxu0
    %v1256 = vpop.f32.mrf.mxu0
    %v1257 = vpop.f32.mrf.mxu0
    %1258 = vdwg.mxu0
    %v1259 = vpack.c.bf16 %v1254, %v1254
    %v1260 = vmul.bf16 %v1259, 1045249613
    %v1261 = vmax.bf16 %v1259, %v1260
    %1263 = vset.pattern.permute.xlu0 0
    %1264 = vperm.xlu0 %1263, %v254
    %v1265 = vpop.permute.xlu0 %1264
    %v1267 = vlaneseq
    %v1268 = vshrl.u32 %v1267, 7
    %v1269 = vsub.s32 0, %v1268
    %v1270 = vrot.slane %v1265, %v1269
    %1271 = vmatprep.subr.bf16.mxu0 0
    %1272 = vmatpush1.bf16.xpose.msra.mxu0 0
    %1273 = vmatprep.subr.bf16.mxu0 0
    %1274 = vmatpush1.bf16.xpose.msra.mxu0 0
    %1275 = vmatprep.subr.bf16.mxu0 0
    %1276 = vmatpush1.bf16.xpose.msra.mxu0 0
    %1277 = vmatprep.subr.bf16.mxu0 0
    %1278 = vmatpush1.bf16.xpose.msra.mxu0 0
    %1279 = vmatprep.subr.bf16.mxu0 0
    %1280 = vmatpush1.bf16.xpose.msra.mxu0 0
    %1281 = vmatprep.subr.bf16.mxu0 0
    %1282 = vmatpush1.bf16.xpose.msra.mxu0 0
    %1283 = vmatprep.subr.bf16.mxu0 0
    %1284 = vmatpush1.bf16.xpose.msra.mxu0 0
    %1285 = vmatprep.subr.bf16.mxu0 0
    %1286 = vmatpush1.bf16.xpose.msra.mxu0 %v1261
    %1287 = vmatprep.subr.bf16.mxu0 0
    %1288 = vmatpush2.bf16.xpose.msra.mxu0 0
    %1289 = vmatprep.subr.bf16.mxu0 0
    %1290 = vmatpush2.bf16.xpose.msra.mxu0 0
    %1291 = vmatprep.subr.bf16.mxu0 0
    %1292 = vmatpush2.bf16.xpose.msra.mxu0 0
    %1293 = vmatprep.subr.bf16.mxu0 0
    %1294 = vmatpush2.bf16.xpose.msra.mxu0 0
    %1295 = vmatprep.subr.bf16.mxu0 0
    %1296 = vmatpush2.bf16.xpose.msra.mxu0 0
    %1297 = vmatprep.subr.bf16.mxu0 0
    %1298 = vmatpush2.bf16.xpose.msra.mxu0 0
    %1299 = vmatprep.subr.bf16.mxu0 0
    %1300 = vmatpush2.bf16.xpose.msra.mxu0 0
    %1301 = vmatprep.subr.bf16.mxu0 0
    %1302 = vmatpush2.bf16.xpose.msra.mxu0 0
    %1303 = vmatprep.mubr.bf16.mxu0 0
    %1304 = vmatmul.mubr.bf16.gmra.mxu0 %v253
    %v1305 = vpop.f32.mrf.mxu0
    %v1306 = vadd.f32 %v1270, %v1305
    %v1307 = vpop.f32.mrf.mxu0
    %v1308 = vpop.f32.mrf.mxu0
    %v1309 = vpop.f32.mrf.mxu0
    %1310 = vdwg.mxu0
    %v1311 = vsub.f32 0.0, %v1306
    %v1312 = vmul.f32 %v1311, 1.442695
    %v1313 = vpow.pop %v1312
    %v1314 = vadd.f32 %v1313, 1.0
    %v1315 = vrcp.pop %v1314
    %v1316 = vmul.f32 1.0, %v1315
    %vm1317 = vcmask 57344
    %1318 = vst.msk [vmem:[#allocation11] sm:$0x1] %vm1317, %v1316
    // Predicated region
    $region54: #{tpu_custom_call.1} parent=1 // pred_check
      _
    $region55: #{tpu_custom_call.1} parent=1 // pred_check_branch
      %1320 = sbr.rel (0) target = $region57
    $region56: #{tpu_custom_call.1} parent=1 // pred_region
      %s1322 = ssub.s32 16, 16
      %1323 = vsyncadd [#allocation5], %s1322
      %s1325 = sshll.u32 [#allocation11], 4
      %s1326 = int_to_ptr.vmem [resolvable:$true] %s1325
      %1328 = dma.vmem_to_hbm [thread:$0]  %s1326, 16, %s9, [#allocation5]
    $region57: #{tpu_custom_call.1} parent=1 // pred_fallthru
      _
    // Predicated region
    $region58: #{tpu_custom_call.1} parent=1 // pred_check
      _
    $region59: #{tpu_custom_call.1} parent=1 // pred_check_branch
      %1330 = sbr.rel (0) target = $region61
    $region60: #{tpu_custom_call.1} parent=1 // pred_region
      %1331 = dma.done [#allocation5], 16
    $region61: #{tpu_custom_call.1} parent=1 // pred_fallthru
      _
    %1332 = vsyncpa [#allocation4], 1
    %1333 = vsyncpa [#allocation7], 1
    %1334 = vsyncpa [#allocation10], 1
    %1335 = vsyncpa [#allocation5], 1

</llo_original>
